<compile_context>
chip_gen: v5e
topology: v5e:2x2
jax: 0.10.0
libtpu: 0.0.40
codegen_flags: <defaults>
</compile_context>

<pallas_src>
import math

import jax
import jax.numpy as jnp
from jax.experimental import pallas as pl
from jax.experimental.pallas import tpu as pltpu

_LANE = 128
_SUBLANE = 8


def _round_up(n, m):
    return ((n + m - 1) // m) * m


def _mlp_kernel(x_ref, w_ref, b_ref, o_ref):
    """Fused 4-layer MLP forward on one (TB, P) batch tile.

    x_ref : (TB, P) f32      zero-padded input tile
    w_ref : (4, P, P)        stacked, zero-padded weights (f32 or bf16)
    b_ref : (8, P)  f32      stacked, zero-padded biases (rows 0..3 used)
    o_ref : (TB, P) f32      lane-dense output slab; column 0 holds the value
    """
    cd = w_ref.dtype  # matmul operand dtype (f32 or bf16); accumulation is f32

    h = x_ref[...].astype(cd)
    h = jnp.dot(h, w_ref[0], preferred_element_type=jnp.float32) + b_ref[0:1, :]
    h = jnp.maximum(h, 0.0)

    h = jnp.dot(h.astype(cd), w_ref[1], preferred_element_type=jnp.float32) + b_ref[1:2, :]
    h = jnp.maximum(h, 0.0)

    h = jnp.dot(h.astype(cd), w_ref[2], preferred_element_type=jnp.float32) + b_ref[2:3, :]
    h = jnp.maximum(h, 0.0)

    # Final layer: padded to a full 128-wide MXU tile (only column 0 is nonzero),
    # which keeps the output store lane-dense/unmasked.
    out = jnp.dot(h.astype(cd), w_ref[3], preferred_element_type=jnp.float32) + b_ref[3:4, :]
    o_ref[...] = out.astype(o_ref.dtype)


def value_network_forward(x, w_stacked, b_stacked, *, block_batch=1024):
    """Run the ValueNetwork forward pass with a single batch-gridded Pallas call.

    x         : (B, obs_dim) float32
    w_stacked : (4, P, P) packed padded weights (see pack_params)
    b_stacked : (8, P) float32 packed padded biases (rows 0..3 used)
    returns   : (B, 1) float32
    """
    B, obs_dim = x.shape
    P = w_stacked.shape[-1]

    TB = min(block_batch, _round_up(B, _SUBLANE))  # batch tile, multiple of 8 sublanes
    B_pad = _round_up(B, TB)

    # Zero-pad the batch to a tile multiple and the feature dim to P lanes.
    xp = jnp.zeros((B_pad, P), jnp.float32).at[:B, :obs_dim].set(x)

    grid = (B_pad // TB,)

    out_padded = pl.pallas_call(
        _mlp_kernel,
        out_shape=jax.ShapeDtypeStruct((B_pad, P), jnp.float32),
        grid=grid,
        in_specs=[
            pl.BlockSpec((TB, P), lambda i: (i, 0)),        # x: one batch tile per step
            pl.BlockSpec((4, P, P), lambda i: (0, 0, 0)),   # weights: resident (constant block)
            pl.BlockSpec((_SUBLANE, P), lambda i: (0, 0)),  # biases:  resident (constant block)
        ],
        out_specs=pl.BlockSpec((TB, P), lambda i: (i, 0)),
        compiler_params=pltpu.CompilerParams(
            dimension_semantics=("parallel",),        # shard batch across TCs on v7x
            vmem_limit_bytes=32 * 1024 * 1024,        # safe on v5e (16M default) / v6e / v7x
        ),
    )(xp, w_stacked, b_stacked)

    return out_padded[:B, :1]


def init_value_network_params(key, obs_dim, hid1_mult=10):
    """Unpadded params matching torch.nn.Linear defaults (U(-1/sqrt(in), 1/sqrt(in))).

    Weights are stored (in_features, out_features) so y = x @ W + b.
    """
    hid1 = obs_dim * hid1_mult
    hid3 = hid1_mult
    hid2 = int(math.sqrt(hid1 * hid3))
    dims = [(obs_dim, hid1), (hid1, hid2), (hid2, hid3), (hid3, 1)]

    params = {}
    for i, (fan_in, fan_out) in enumerate(dims, start=1):
        key, kw, kb = jax.random.split(key, 3)
        bound = 1.0 / math.sqrt(fan_in)
        params[f"w{i}"] = jax.random.uniform(
            kw, (fan_in, fan_out), jnp.float32, minval=-bound, maxval=bound)
        params[f"b{i}"] = jax.random.uniform(
            kb, (1, fan_out), jnp.float32, minval=-bound, maxval=bound)
    return params


def pack_params(params, matmul_dtype=jnp.float32, lane=_LANE):
    """Zero-pad all feature dims to a common multiple of `lane` and stack layers.

    Returns (W, Bias, P) with W: (4, P, P) in `matmul_dtype`,
    Bias: (8, P) f32 (rows 0..3 hold the 4 layer biases, rows 4..7 are zero).
    Zero pad rows/cols are mathematically inert through ReLU.
    """
    pads = []
    for i in range(1, 5):
        fi, fo = params[f"w{i}"].shape
        pads += [_round_up(fi, lane), _round_up(fo, lane)]
    P = max(pads)

    ws = []
    Bias = jnp.zeros((_SUBLANE, P), jnp.float32)
    for i in range(1, 5):
        w = params[f"w{i}"]
        b = params[f"b{i}"]
        ws.append(jnp.zeros((P, P), jnp.float32).at[:w.shape[0], :w.shape[1]].set(w))
        Bias = Bias.at[i - 1, :b.shape[1]].set(b[0])

    W = jnp.stack(ws).astype(matmul_dtype)   # (4, P, P)
    return W, Bias, P


def _reference_forward(x, params):
    """Pure-JAX f32 reference for correctness checking."""
    h = jnp.maximum(x @ params["w1"] + params["b1"], 0.0)
    h = jnp.maximum(h @ params["w2"] + params["b2"], 0.0)
    h = jnp.maximum(h @ params["w3"] + params["b3"], 0.0)
    return h @ params["w4"] + params["b4"]


if __name__ == "__main__":
    obs_dim = 7          # N = 7 (switch with 7 input ports)
    hid1_mult = 10
    batch = 8

    key = jax.random.PRNGKey(0)
    key, kx = jax.random.split(key)
    x = jax.random.normal(kx, (batch, obs_dim), dtype=jnp.float32)

    params = init_value_network_params(key, obs_dim, hid1_mult)
    ref = _reference_forward(x, params)

    fwd = jax.jit(value_network_forward, static_argnames=("block_batch",))

    # f32 matmul path: zero-padding is exact, so results match the reference tightly.
    w_f32, b_f32, _ = pack_params(params, matmul_dtype=jnp.float32)
    out_f32 = jax.block_until_ready(fwd(x, w_f32, b_f32))
    assert out_f32.shape == (batch, 1), out_f32.shape
    assert jnp.allclose(out_f32, ref, atol=1e-5, rtol=1e-5), "f32 mismatch vs reference"

    # bf16 matmul path (MXU-native on v5e/v6e/v7x); f32 accumulation, looser tolerance.
    w_bf16, b_bf16, _ = pack_params(params, matmul_dtype=jnp.bfloat16)
    out_bf16 = jax.block_until_ready(fwd(x, w_bf16, b_bf16))
    assert out_bf16.shape == (batch, 1), out_bf16.shape
    assert jnp.allclose(out_bf16, ref, atol=1e-1, rtol=1e-1), "bf16 mismatch vs reference"

    print("KERNEL_OK")
</pallas_src>

<mosaic_0001>
module attributes {stable_mosaic.version = 11 : i64} {
  func.func @_mlp_kernel(%arg0: i32, %arg1: memref<8x128xf32, #tpu.memory_space<vmem>>, %arg2: memref<4x128x128xf32, #tpu.memory_space<vmem>>, %arg3: memref<8x128xf32, #tpu.memory_space<vmem>>, %arg4: memref<8x128xf32, #tpu.memory_space<vmem>>) attributes {dimension_semantics = [#tpu.dimension_semantics<parallel>], iteration_bounds = array<i64: 1>, scalar_prefetch = 0 : i64, scratch_operands = 0 : i64, tpu.core_type = #tpu.core_type<tc>, window_params = [{transform_indices = @transform_0, window_bounds = array<i64: 8, 128>}, {pipeline_mode = #tpu.pipeline_mode<synchronous>, transform_indices = @transform_1, window_bounds = array<i64: 4, 128, 128>}, {pipeline_mode = #tpu.pipeline_mode<synchronous>, transform_indices = @transform_2, window_bounds = array<i64: 8, 128>}, {transform_indices = @transform_3, window_bounds = array<i64: 8, 128>}]} {
    %c0 = arith.constant 0 : index
    %c0_0 = arith.constant 0 : index
    %0 = vector.load %arg1[%c0, %c0_0] : memref<8x128xf32, #tpu.memory_space<vmem>>, vector<8x128xf32>
    %c0_1 = arith.constant 0 : index
    %c0_2 = arith.constant 0 : index
    %c0_3 = arith.constant 0 : index
    %1 = vector.load %arg2[%c0_1, %c0_2, %c0_3] : memref<4x128x128xf32, #tpu.memory_space<vmem>>, vector<1x128x128xf32>
    %2 = vector.shape_cast %1 : vector<1x128x128xf32> to vector<128x128xf32>
    %cst = arith.constant dense<0.000000e+00> : vector<8x128xf32>
    %3 = tpu.matmul %0, %2, %cst {dimension_numbers = #tpu.dot_dimension_numbers<[1], [0], [0], [1], [0, 0, 1, 1], [], []>} : vector<8x128xf32>, vector<128x128xf32>, vector<8x128xf32> -> vector<8x128xf32>
    %c0_4 = arith.constant 0 : index
    %c0_5 = arith.constant 0 : index
    %4 = vector.load %arg3[%c0_4, %c0_5] : memref<8x128xf32, #tpu.memory_space<vmem>>, vector<1x128xf32>
    %5 = vector.broadcast %4 : vector<1x128xf32> to vector<8x128xf32>
    %6 = arith.addf %3, %5 : vector<8x128xf32>
    %cst_6 = arith.constant 0.000000e+00 : f32
    %7 = vector.broadcast %cst_6 : f32 to vector<8x128xf32>
    %8 = arith.maximumf %6, %7 : vector<8x128xf32>
    %c1 = arith.constant 1 : index
    %c0_7 = arith.constant 0 : index
    %c0_8 = arith.constant 0 : index
    %9 = vector.load %arg2[%c1, %c0_7, %c0_8] : memref<4x128x128xf32, #tpu.memory_space<vmem>>, vector<1x128x128xf32>
    %10 = vector.shape_cast %9 : vector<1x128x128xf32> to vector<128x128xf32>
    %cst_9 = arith.constant dense<0.000000e+00> : vector<8x128xf32>
    %11 = tpu.matmul %8, %10, %cst_9 {dimension_numbers = #tpu.dot_dimension_numbers<[1], [0], [0], [1], [0, 0, 1, 1], [], []>} : vector<8x128xf32>, vector<128x128xf32>, vector<8x128xf32> -> vector<8x128xf32>
    %c1_10 = arith.constant 1 : index
    %c0_11 = arith.constant 0 : index
    %12 = vector.load %arg3[%c1_10, %c0_11] : memref<8x128xf32, #tpu.memory_space<vmem>>, vector<1x128xf32>
    %13 = vector.broadcast %12 : vector<1x128xf32> to vector<8x128xf32>
    %14 = arith.addf %11, %13 : vector<8x128xf32>
    %cst_12 = arith.constant 0.000000e+00 : f32
    %15 = vector.broadcast %cst_12 : f32 to vector<8x128xf32>
    %16 = arith.maximumf %14, %15 : vector<8x128xf32>
    %c2 = arith.constant 2 : index
    %c0_13 = arith.constant 0 : index
    %c0_14 = arith.constant 0 : index
    %17 = vector.load %arg2[%c2, %c0_13, %c0_14] : memref<4x128x128xf32, #tpu.memory_space<vmem>>, vector<1x128x128xf32>
    %18 = vector.shape_cast %17 : vector<1x128x128xf32> to vector<128x128xf32>
    %cst_15 = arith.constant dense<0.000000e+00> : vector<8x128xf32>
    %19 = tpu.matmul %16, %18, %cst_15 {dimension_numbers = #tpu.dot_dimension_numbers<[1], [0], [0], [1], [0, 0, 1, 1], [], []>} : vector<8x128xf32>, vector<128x128xf32>, vector<8x128xf32> -> vector<8x128xf32>
    %c2_16 = arith.constant 2 : index
    %c0_17 = arith.constant 0 : index
    %20 = vector.load %arg3[%c2_16, %c0_17] : memref<8x128xf32, #tpu.memory_space<vmem>>, vector<1x128xf32>
    %21 = vector.broadcast %20 : vector<1x128xf32> to vector<8x128xf32>
    %22 = arith.addf %19, %21 : vector<8x128xf32>
    %cst_18 = arith.constant 0.000000e+00 : f32
    %23 = vector.broadcast %cst_18 : f32 to vector<8x128xf32>
    %24 = arith.maximumf %22, %23 : vector<8x128xf32>
    %c3 = arith.constant 3 : index
    %c0_19 = arith.constant 0 : index
    %c0_20 = arith.constant 0 : index
    %25 = vector.load %arg2[%c3, %c0_19, %c0_20] : memref<4x128x128xf32, #tpu.memory_space<vmem>>, vector<1x128x128xf32>
    %26 = vector.shape_cast %25 : vector<1x128x128xf32> to vector<128x128xf32>
    %cst_21 = arith.constant dense<0.000000e+00> : vector<8x128xf32>
    %27 = tpu.matmul %24, %26, %cst_21 {dimension_numbers = #tpu.dot_dimension_numbers<[1], [0], [0], [1], [0, 0, 1, 1], [], []>} : vector<8x128xf32>, vector<128x128xf32>, vector<8x128xf32> -> vector<8x128xf32>
    %c3_22 = arith.constant 3 : index
    %c0_23 = arith.constant 0 : index
    %28 = vector.load %arg3[%c3_22, %c0_23] : memref<8x128xf32, #tpu.memory_space<vmem>>, vector<1x128xf32>
    %29 = vector.broadcast %28 : vector<1x128xf32> to vector<8x128xf32>
    %30 = arith.addf %27, %29 : vector<8x128xf32>
    %c0_24 = arith.constant 0 : index
    %c0_25 = arith.constant 0 : index
    %31 = vector.load %arg4[%c0_24, %c0_25] : memref<8x128xf32, #tpu.memory_space<vmem>>, vector<8x128xf32>
    tpu.vector_store %arg4[%c0_24, %c0_25], %30 {strides = array<i32>} : memref<8x128xf32, #tpu.memory_space<vmem>>, vector<8x128xf32>,
    return
  }
  func.func @transform_0(%arg0: i32) -> (i32, i32) {
    %c0_i32 = arith.constant 0 : i32
    %c0_i32_0 = arith.constant 0 : i32
    return %arg0, %c0_i32 : i32, i32
  }
  func.func @transform_1(%arg0: i32) -> (i32, i32, i32) {
    %c0_i32 = arith.constant 0 : i32
    %c0_i32_0 = arith.constant 0 : i32
    %c0_i32_1 = arith.constant 0 : i32
    %c0_i32_2 = arith.constant 0 : i32
    return %c0_i32, %c0_i32_0, %c0_i32_1 : i32, i32, i32
  }
  func.func @transform_2(%arg0: i32) -> (i32, i32) {
    %c0_i32 = arith.constant 0 : i32
    %c0_i32_0 = arith.constant 0 : i32
    %c0_i32_1 = arith.constant 0 : i32
    return %c0_i32, %c0_i32_0 : i32, i32
  }
  func.func @transform_3(%arg0: i32) -> (i32, i32) {
    %c0_i32 = arith.constant 0 : i32
    %c0_i32_0 = arith.constant 0 : i32
    return %arg0, %c0_i32 : i32, i32
  }
}

</mosaic_0001>

<llo_original>
// kernel: value_network_forward.1
$region0: #{value_network_forward.1}
  #allocation0 [shape = 'u32[]', space=smem, size = 0x4, offset = 0x4, fixed_abs, tag = 'smem constant byte address 0x4 - core index']
  #allocation1 [shape = 'u32[72,128]{1,0:T(1,128)}', space=vmem, size = 0x9000, scoped, tag = 'internal scratch']
  %s0 = inlined_call_operand.vmem [shape: f32[8,128], index: 0, kind: input, shape index: {}]
  %s1 = inlined_call_operand.hbm [shape: f32[4,128,128], index: 1, kind: input, shape index: {}]
  %s2 = inlined_call_operand.vmem [shape: f32[8,128], index: 2, kind: input, shape index: {}]
  %s3 = inlined_call_operand.vmem [shape: f32[8,128], index: 3, kind: output, shape index: {}]
  %s4 = sld [smem:[#allocation0]]
  $region26: #{value_network_forward.1} parent=0
    _
  %s6 = ssub.s32 1, %s4
  %s7 = scalar_select 0, %s6, %s4
  $region1: #{value_network_forward.1} parent=0
    #allocation2 [shape = 'u8[262144]{0}', space=vmem, size = 0x40000, scoped, tag = 'input window, operand 1, single buffered']
    #allocation3 [shape = 's32[1]{0}', space=sflag, size = 0x4, scoped, tag = 'scoped memory for value_network_forward.1']
    %8 = vsyncpa [#allocation3], 0
    // Predicated region
    $region2: #{value_network_forward.1} parent=1 // pred_check
      _
    $region3: #{value_network_forward.1} parent=1 // pred_check_branch
      %10 = sbr.rel (0) target = $region5
    $region4: #{value_network_forward.1} parent=1 // pred_region
      _
    $region5: #{value_network_forward.1} parent=1 // pred_fallthru
      _
    // Predicated region
    $region6: #{value_network_forward.1} parent=1 // pred_check
      _
    $region7: #{value_network_forward.1} parent=1 // pred_check_branch
      %12 = sbr.rel (0) target = $region9
    $region8: #{value_network_forward.1} parent=1 // pred_region
      %14 = vsyncadd [#allocation3], 0
      %s15 = sshll.u32 %s1, 4
      %s16 = int_to_ptr.hbm [resolvable:$true] %s15
      %s17 = sshll.u32 [#allocation2], 4
      %s18 = int_to_ptr.vmem [resolvable:$true] %s17
      %23 = dma.hbm_to_vmem [thread:$0]  %s16, 8192, %s18, [#allocation3], 128, 128, 8
    $region9: #{value_network_forward.1} parent=1 // pred_fallthru
      _
    // Predicated region
    $region10: #{value_network_forward.1} parent=1 // pred_check
      _
    $region11: #{value_network_forward.1} parent=1 // pred_check_branch
      %25 = sbr.rel (0) target = $region13
    $region12: #{value_network_forward.1} parent=1 // pred_region
      _
    $region13: #{value_network_forward.1} parent=1 // pred_fallthru
      _
    // Predicated region
    $region14: #{value_network_forward.1} parent=1 // pred_check
      _
    $region15: #{value_network_forward.1} parent=1 // pred_check_branch
      %27 = sbr.rel (0) target = $region17
    $region16: #{value_network_forward.1} parent=1 // pred_region
      %29 = dma.done [#allocation3], 8192
    $region17: #{value_network_forward.1} parent=1 // pred_fallthru
      _
    %v30 = vld [vmem:[%s0] sm:$0xff]
    %v31 = vld [vmem:[#allocation2] sm:$0xff]
    %v32 = vld [vmem:[#allocation2 + $0x8] sm:$0xff]
    %v33 = vld [vmem:[#allocation2 + $0x10] sm:$0xff]
    %v34 = vld [vmem:[#allocation2 + $0x18] sm:$0xff]
    %v35 = vld [vmem:[#allocation2 + $0x20] sm:$0xff]
    %v36 = vld [vmem:[#allocation2 + $0x28] sm:$0xff]
    %v37 = vld [vmem:[#allocation2 + $0x30] sm:$0xff]
    %v38 = vld [vmem:[#allocation2 + $0x38] sm:$0xff]
    %v39 = vld [vmem:[#allocation2 + $0x40] sm:$0xff]
    %v40 = vld [vmem:[#allocation2 + $0x48] sm:$0xff]
    %v41 = vld [vmem:[#allocation2 + $0x50] sm:$0xff]
    %v42 = vld [vmem:[#allocation2 + $0x58] sm:$0xff]
    %v43 = vld [vmem:[#allocation2 + $0x60] sm:$0xff]
    %v44 = vld [vmem:[#allocation2 + $0x68] sm:$0xff]
    %v45 = vld [vmem:[#allocation2 + $0x70] sm:$0xff]
    %v46 = vld [vmem:[#allocation2 + $0x78] sm:$0xff]
    %v47 = vld [vmem:[%s2] sm:$0x1]
    %v48 = vperm.slane %v47, 0
    %49 = vmatpush.msra.mxu0 %v46
    %50 = vmatpush.msra.mxu0 %v45
    %51 = vmatpush.msra.mxu0 %v44
    %52 = vmatpush.msra.mxu0 %v43
    %53 = vmatpush.msra.mxu0 %v42
    %54 = vmatpush.msra.mxu0 %v41
    %55 = vmatpush.msra.mxu0 %v40
    %56 = vmatpush.msra.mxu0 %v39
    %57 = vmatpush.msra.mxu0 %v38
    %58 = vmatpush.msra.mxu0 %v37
    %59 = vmatpush.msra.mxu0 %v36
    %60 = vmatpush.msra.mxu0 %v35
    %61 = vmatpush.msra.mxu0 %v34
    %62 = vmatpush.msra.mxu0 %v33
    %63 = vmatpush.msra.mxu0 %v32
    %64 = vmatpush.msra.mxu0 %v31
    %65 = vmatmul.f32.gmra.mxu0 %v30
    %v66 = vpop.f32.mrf.mxu0
    %v67 = vadd.f32 %v48, %v66
    %68 = vdwg.mxu0
    %v69 = vmax.f32 %v67, 0.0
    %s70 = scalar_lea.vmem [#allocation2], 128
    %v71 = vld [vmem:[%s70] sm:$0xff]
    %v72 = vld [vmem:[%s70 + $0x8] sm:$0xff]
    %v73 = vld [vmem:[%s70 + $0x10] sm:$0xff]
    %v74 = vld [vmem:[%s70 + $0x18] sm:$0xff]
    %v75 = vld [vmem:[%s70 + $0x20] sm:$0xff]
    %v76 = vld [vmem:[%s70 + $0x28] sm:$0xff]
    %v77 = vld [vmem:[%s70 + $0x30] sm:$0xff]
    %v78 = vld [vmem:[%s70 + $0x38] sm:$0xff]
    %v79 = vld [vmem:[%s70 + $0x40] sm:$0xff]
    %v80 = vld [vmem:[%s70 + $0x48] sm:$0xff]
    %v81 = vld [vmem:[%s70 + $0x50] sm:$0xff]
    %v82 = vld [vmem:[%s70 + $0x58] sm:$0xff]
    %v83 = vld [vmem:[%s70 + $0x60] sm:$0xff]
    %v84 = vld [vmem:[%s70 + $0x68] sm:$0xff]
    %v85 = vld [vmem:[%s70 + $0x70] sm:$0xff]
    %v86 = vld [vmem:[%s70 + $0x78] sm:$0xff]
    %v87 = vld [vmem:[%s2 + $0x1] sm:$0x1]
    %v88 = vperm.slane %v87, 0
    %89 = vmatpush.msra.mxu0 %v86
    %90 = vmatpush.msra.mxu0 %v85
    %91 = vmatpush.msra.mxu0 %v84
    %92 = vmatpush.msra.mxu0 %v83
    %93 = vmatpush.msra.mxu0 %v82
    %94 = vmatpush.msra.mxu0 %v81
    %95 = vmatpush.msra.mxu0 %v80
    %96 = vmatpush.msra.mxu0 %v79
    %97 = vmatpush.msra.mxu0 %v78
    %98 = vmatpush.msra.mxu0 %v77
    %99 = vmatpush.msra.mxu0 %v76
    %100 = vmatpush.msra.mxu0 %v75
    %101 = vmatpush.msra.mxu0 %v74
    %102 = vmatpush.msra.mxu0 %v73
    %103 = vmatpush.msra.mxu0 %v72
    %104 = vmatpush.msra.mxu0 %v71
    %105 = vmatmul.f32.gmra.mxu0 %v69
    %v106 = vpop.f32.mrf.mxu0
    %v107 = vadd.f32 %v88, %v106
    %108 = vdwg.mxu0
    %v109 = vmax.f32 %v107, 0.0
    %s110 = scalar_lea.vmem [#allocation2], 256
    %v111 = vld [vmem:[%s110] sm:$0xff]
    %v112 = vld [vmem:[%s110 + $0x8] sm:$0xff]
    %v113 = vld [vmem:[%s110 + $0x10] sm:$0xff]
    %v114 = vld [vmem:[%s110 + $0x18] sm:$0xff]
    %v115 = vld [vmem:[%s110 + $0x20] sm:$0xff]
    %v116 = vld [vmem:[%s110 + $0x28] sm:$0xff]
    %v117 = vld [vmem:[%s110 + $0x30] sm:$0xff]
    %v118 = vld [vmem:[%s110 + $0x38] sm:$0xff]
    %v119 = vld [vmem:[%s110 + $0x40] sm:$0xff]
    %v120 = vld [vmem:[%s110 + $0x48] sm:$0xff]
    %v121 = vld [vmem:[%s110 + $0x50] sm:$0xff]
    %v122 = vld [vmem:[%s110 + $0x58] sm:$0xff]
    %v123 = vld [vmem:[%s110 + $0x60] sm:$0xff]
    %v124 = vld [vmem:[%s110 + $0x68] sm:$0xff]
    %v125 = vld [vmem:[%s110 + $0x70] sm:$0xff]
    %v126 = vld [vmem:[%s110 + $0x78] sm:$0xff]
    %v127 = vld [vmem:[%s2 + $0x2] sm:$0x1]
    %v128 = vperm.slane %v127, 0
    %129 = vmatpush.msra.mxu0 %v126
    %130 = vmatpush.msra.mxu0 %v125
    %131 = vmatpush.msra.mxu0 %v124
    %132 = vmatpush.msra.mxu0 %v123
    %133 = vmatpush.msra.mxu0 %v122
    %134 = vmatpush.msra.mxu0 %v121
    %135 = vmatpush.msra.mxu0 %v120
    %136 = vmatpush.msra.mxu0 %v119
    %137 = vmatpush.msra.mxu0 %v118
    %138 = vmatpush.msra.mxu0 %v117
    %139 = vmatpush.msra.mxu0 %v116
    %140 = vmatpush.msra.mxu0 %v115
    %141 = vmatpush.msra.mxu0 %v114
    %142 = vmatpush.msra.mxu0 %v113
    %143 = vmatpush.msra.mxu0 %v112
    %144 = vmatpush.msra.mxu0 %v111
    %145 = vmatmul.f32.gmra.mxu0 %v109
    %v146 = vpop.f32.mrf.mxu0
    %v147 = vadd.f32 %v128, %v146
    %148 = vdwg.mxu0
    %v149 = vmax.f32 %v147, 0.0
    %s150 = scalar_lea.vmem [#allocation2], 384
    %v151 = vld [vmem:[%s150] sm:$0xff]
    %v152 = vld [vmem:[%s150 + $0x8] sm:$0xff]
    %v153 = vld [vmem:[%s150 + $0x10] sm:$0xff]
    %v154 = vld [vmem:[%s150 + $0x18] sm:$0xff]
    %v155 = vld [vmem:[%s150 + $0x20] sm:$0xff]
    %v156 = vld [vmem:[%s150 + $0x28] sm:$0xff]
    %v157 = vld [vmem:[%s150 + $0x30] sm:$0xff]
    %v158 = vld [vmem:[%s150 + $0x38] sm:$0xff]
    %v159 = vld [vmem:[%s150 + $0x40] sm:$0xff]
    %v160 = vld [vmem:[%s150 + $0x48] sm:$0xff]
    %v161 = vld [vmem:[%s150 + $0x50] sm:$0xff]
    %v162 = vld [vmem:[%s150 + $0x58] sm:$0xff]
    %v163 = vld [vmem:[%s150 + $0x60] sm:$0xff]
    %v164 = vld [vmem:[%s150 + $0x68] sm:$0xff]
    %v165 = vld [vmem:[%s150 + $0x70] sm:$0xff]
    %v166 = vld [vmem:[%s150 + $0x78] sm:$0xff]
    %v167 = vld [vmem:[%s2 + $0x3] sm:$0x1]
    %v168 = vperm.slane %v167, 0
    %169 = vmatpush.msra.mxu0 %v166
    %170 = vmatpush.msra.mxu0 %v165
    %171 = vmatpush.msra.mxu0 %v164
    %172 = vmatpush.msra.mxu0 %v163
    %173 = vmatpush.msra.mxu0 %v162
    %174 = vmatpush.msra.mxu0 %v161
    %175 = vmatpush.msra.mxu0 %v160
    %176 = vmatpush.msra.mxu0 %v159
    %177 = vmatpush.msra.mxu0 %v158
    %178 = vmatpush.msra.mxu0 %v157
    %179 = vmatpush.msra.mxu0 %v156
    %180 = vmatpush.msra.mxu0 %v155
    %181 = vmatpush.msra.mxu0 %v154
    %182 = vmatpush.msra.mxu0 %v153
    %183 = vmatpush.msra.mxu0 %v152
    %184 = vmatpush.msra.mxu0 %v151
    %185 = vmatmul.f32.gmra.mxu0 %v149
    %v186 = vpop.f32.mrf.mxu0
    %v187 = vadd.f32 %v168, %v186
    %188 = vdwg.mxu0
    %189 = vst [vmem:[%s3] sm:$0xff] %v187
    // Predicated region
    $region18: #{value_network_forward.1} parent=1 // pred_check
      _
    $region19: #{value_network_forward.1} parent=1 // pred_check_branch
      %191 = sbr.rel (0) target = $region21
    $region20: #{value_network_forward.1} parent=1 // pred_region
      _
    $region21: #{value_network_forward.1} parent=1 // pred_fallthru
      _
    // Predicated region
    $region22: #{value_network_forward.1} parent=1 // pred_check
      _
    $region23: #{value_network_forward.1} parent=1 // pred_check_branch
      %193 = sbr.rel (0) target = $region25
    $region24: #{value_network_forward.1} parent=1 // pred_region
      _
    $region25: #{value_network_forward.1} parent=1 // pred_fallthru
      _
    %194 = vsyncpa [#allocation3], 1

</llo_original>
